<compile_context>
chip_gen: v6e
topology: v6e:2x2x1
jax: 0.10.0
libtpu: 0.0.40
codegen_flags: <defaults>
</compile_context>

<pallas_src>
import jax
import jax.numpy as jnp
from jax.experimental import pallas as pl
from jax.experimental.pallas import tpu as pltpu


def _c3_kernel(p_ref, w_ref, b_ref, o_ref):
    # p_ref: (M, K) im2col patches     w_ref: (K, COUT_PAD)
    # b_ref: (1, COUT_PAD)             o_ref: (M, COUT_PAD)
    acc = jnp.dot(p_ref[...], w_ref[...], preferred_element_type=jnp.float32)
    o_ref[...] = jnp.maximum(acc + b_ref[...], 0.0).astype(o_ref.dtype)


def c3_forward(x_nchw, w_oihw, bias):
    """Conv2d(16, 120, k=5, stride=1, pad=0) + ReLU, matching PyTorch semantics."""
    N, CIN, H, W = x_nchw.shape
    COUT, _, KH, KW = w_oihw.shape
    OH, OW = H - KH + 1, W - KW + 1
    M = N * OH * OW                      # matmul rows (whole batch fused)
    K = KH * KW * CIN                    # contraction = 5*5*16 = 400
    COUT_PAD = ((COUT + 127) // 128) * 128  # 120 -> 128 lane-dense output

    # ---- wrapper-side layout prep (all tiny: <64 KB total) -----------------
    # NCHW -> NHWC, then im2col with tap order (kh, kw, cin).
    x = jnp.transpose(x_nchw, (0, 2, 3, 1)).astype(jnp.float32)
    taps = [x[:, kh:kh + OH, kw:kw + OW, :]
            for kh in range(KH) for kw in range(KW)]          # 25 x (N,OH,OW,CIN)
    patches = jnp.stack(taps, axis=3).reshape(M, K)           # (M, 400)

    # OIHW -> (KH, KW, CIN, COUT) -> (K, COUT), zero-pad COUT to 128.
    w2d = jnp.transpose(w_oihw, (2, 3, 1, 0)).reshape(K, COUT).astype(jnp.float32)
    w2d = jnp.pad(w2d, ((0, 0), (0, COUT_PAD - COUT)))
    b2d = jnp.pad(bias.astype(jnp.float32),
                  (0, COUT_PAD - COUT)).reshape(1, COUT_PAD)  # ReLU(0)=0 keeps pad inert

    # ---- single-invocation Pallas kernel -----------------------------------
    out2d = pl.pallas_call(
        _c3_kernel,
        out_shape=jax.ShapeDtypeStruct((M, COUT_PAD), jnp.float32),
        grid_spec=pltpu.PrefetchScalarGridSpec(
            num_scalar_prefetch=0,
            grid=(1,),
            in_specs=[
                pl.BlockSpec((M, K), lambda i: (0, 0)),
                pl.BlockSpec((K, COUT_PAD), lambda i: (0, 0)),
                pl.BlockSpec((1, COUT_PAD), lambda i: (0, 0)),
            ],
            out_specs=pl.BlockSpec((M, COUT_PAD), lambda i: (0, 0)),
        ),
        compiler_params=pltpu.CompilerParams(
            dimension_semantics=("arbitrary",)),
    )(patches, w2d, b2d)

    # Slice off the padded lanes, restore NCHW.
    out = out2d[:, :COUT].reshape(N, OH, OW, COUT)
    return jnp.transpose(out, (0, 3, 1, 2))


def _reference(x_nchw, w_oihw, bias):
    y = jax.lax.conv_general_dilated(
        x_nchw, w_oihw, window_strides=(1, 1), padding="VALID",
        dimension_numbers=("NCHW", "OIHW", "NCHW"))
    return jnp.maximum(y + bias[None, :, None, None], 0.0)


if __name__ == "__main__":
    key = jax.random.PRNGKey(0)
    k_x, k_w, k_b = jax.random.split(key, 3)

    # Small shapes consistent with C3: Conv2d(16 -> 120, 5x5).
    N, CIN, H, W = 2, 16, 8, 8
    COUT, KH, KW = 120, 5, 5

    x = jax.random.normal(k_x, (N, CIN, H, W), dtype=jnp.float32)

    # Deterministic parameter init (PyTorch-style uniform, bound = 1/sqrt(fan_in)).
    fan_in = CIN * KH * KW
    bound = 1.0 / (fan_in ** 0.5)
    w = jax.random.uniform(k_w, (COUT, CIN, KH, KW), dtype=jnp.float32,
                           minval=-bound, maxval=bound)
    b = jax.random.uniform(k_b, (COUT,), dtype=jnp.float32,
                           minval=-bound, maxval=bound)

    out = jax.block_until_ready(c3_forward(x, w, b))
    ref = jax.block_until_ready(_reference(x, w, b))

    assert out.shape == (N, COUT, H - KH + 1, W - KW + 1), out.shape
    assert jnp.allclose(out, ref, atol=1e-3, rtol=1e-3), "mismatch vs reference"

    print("KERNEL_OK")
</pallas_src>

<mosaic_0001>
module attributes {stable_mosaic.version = 11 : i64} {
  func.func @_c3_kernel(%arg0: i32, %arg1: memref<32x400xf32, #tpu.memory_space<vmem>>, %arg2: memref<400x128xf32, #tpu.memory_space<vmem>>, %arg3: memref<1x128xf32, #tpu.memory_space<vmem>>, %arg4: memref<32x128xf32, #tpu.memory_space<vmem>>) attributes {dimension_semantics = [#tpu.dimension_semantics<arbitrary>], iteration_bounds = array<i64: 1>, scalar_prefetch = 0 : i64, scratch_operands = 0 : i64, tpu.core_type = #tpu.core_type<tc>, window_params = [{pipeline_mode = #tpu.pipeline_mode<synchronous>, transform_indices = @transform_0, window_bounds = array<i64: 32, 400>}, {pipeline_mode = #tpu.pipeline_mode<synchronous>, transform_indices = @transform_1, window_bounds = array<i64: 400, 128>}, {pipeline_mode = #tpu.pipeline_mode<synchronous>, transform_indices = @transform_2, window_bounds = array<i64: 1, 128>}, {pipeline_mode = #tpu.pipeline_mode<synchronous>, transform_indices = @transform_3, window_bounds = array<i64: 32, 128>}]} {
    %c0 = arith.constant 0 : index
    %c0_0 = arith.constant 0 : index
    %0 = vector.load %arg1[%c0, %c0_0] : memref<32x400xf32, #tpu.memory_space<vmem>>, vector<32x400xf32>
    %c0_1 = arith.constant 0 : index
    %c0_2 = arith.constant 0 : index
    %1 = vector.load %arg2[%c0_1, %c0_2] : memref<400x128xf32, #tpu.memory_space<vmem>>, vector<400x128xf32>
    %cst = arith.constant dense<0.000000e+00> : vector<32x128xf32>
    %2 = tpu.matmul %0, %1, %cst {dimension_numbers = #tpu.dot_dimension_numbers<[1], [0], [0], [1], [0, 0, 1, 1], [], []>} : vector<32x400xf32>, vector<400x128xf32>, vector<32x128xf32> -> vector<32x128xf32>
    %c0_3 = arith.constant 0 : index
    %c0_4 = arith.constant 0 : index
    %3 = vector.load %arg3[%c0_3, %c0_4] : memref<1x128xf32, #tpu.memory_space<vmem>>, vector<1x128xf32>
    %4 = vector.broadcast %3 : vector<1x128xf32> to vector<32x128xf32>
    %5 = arith.addf %2, %4 : vector<32x128xf32>
    %cst_5 = arith.constant 0.000000e+00 : f32
    %6 = vector.broadcast %cst_5 : f32 to vector<32x128xf32>
    %7 = arith.maximumf %5, %6 : vector<32x128xf32>
    %c0_6 = arith.constant 0 : index
    %c0_7 = arith.constant 0 : index
    %8 = vector.load %arg4[%c0_6, %c0_7] : memref<32x128xf32, #tpu.memory_space<vmem>>, vector<32x128xf32>
    tpu.vector_store %arg4[%c0_6, %c0_7], %7 {strides = array<i32>} : memref<32x128xf32, #tpu.memory_space<vmem>>, vector<32x128xf32>,
    return
  }
  func.func @transform_0(%arg0: i32) -> (i32, i32) {
    %c0_i32 = arith.constant 0 : i32
    %c0_i32_0 = arith.constant 0 : i32
    %c0_i32_1 = arith.constant 0 : i32
    return %c0_i32, %c0_i32_0 : i32, i32
  }
  func.func @transform_1(%arg0: i32) -> (i32, i32) {
    %c0_i32 = arith.constant 0 : i32
    %c0_i32_0 = arith.constant 0 : i32
    %c0_i32_1 = arith.constant 0 : i32
    return %c0_i32, %c0_i32_0 : i32, i32
  }
  func.func @transform_2(%arg0: i32) -> (i32, i32) {
    %c0_i32 = arith.constant 0 : i32
    %c0_i32_0 = arith.constant 0 : i32
    %c0_i32_1 = arith.constant 0 : i32
    return %c0_i32, %c0_i32_0 : i32, i32
  }
  func.func @transform_3(%arg0: i32) -> (i32, i32) {
    %c0_i32 = arith.constant 0 : i32
    %c0_i32_0 = arith.constant 0 : i32
    %c0_i32_1 = arith.constant 0 : i32
    return %c0_i32, %c0_i32_0 : i32, i32
  }
}

</mosaic_0001>

<llo_original>
// kernel: tpu_custom_call.1
$region0: #{tpu_custom_call.1}
  #allocation0 [shape = 'u32[]', space=smem, size = 0x4, offset = 0x4, fixed_abs, tag = 'smem constant byte address 0x4 - core index']
  #allocation1 [shape = 'u32[144,128]{1,0:T(1,128)}', space=vmem, size = 0x12000, scoped, tag = 'internal scratch']
  %s0 = inlined_call_operand.hbm [shape: f32[32,400], index: 0, kind: input, shape index: {}]
  %s1 = inlined_call_operand.hbm [shape: f32[400,128], index: 1, kind: input, shape index: {}]
  %s2 = inlined_call_operand.vmem [shape: f32[1,128], index: 2, kind: input, shape index: {}]
  %s3 = inlined_call_operand.hbm [shape: f32[32,128], index: 3, kind: output, shape index: {}]
  %s4 = sld [smem:[#allocation0]]
  $region30: #{tpu_custom_call.1} parent=0
    _
  %s6 = ssub.s32 1, %s4
  %s7 = scalar_select 0, %s6, %s4
  $region1: #{tpu_custom_call.1} parent=0
    #allocation2 [shape = 'u8[65536]{0}', space=vmem, size = 0x10000, scoped, tag = 'input window, operand 0, single buffered']
    #allocation3 [shape = 's32[1]{0}', space=sflag, size = 0x4, scoped, tag = 'scoped memory for tpu_custom_call.1']
    #allocation4 [shape = 's32[1]{0}', space=sflag, size = 0x4, scoped, tag = 'scoped memory for tpu_custom_call.1']
    #allocation5 [shape = 'u8[204800]{0}', space=vmem, size = 0x32000, scoped, tag = 'input window, operand 1, single buffered']
    #allocation6 [shape = 's32[1]{0}', space=sflag, size = 0x4, scoped, tag = 'scoped memory for tpu_custom_call.1']
    #allocation7 [shape = 'u8[16384]{0}', space=vmem, size = 0x4000, scoped, tag = 'output window, operand 0, single buffered']
    %8 = vsyncpa [#allocation3], 0
    %9 = vsyncpa [#allocation6], 0
    %10 = vsyncpa [#allocation4], 0
    // Predicated region
    $region2: #{tpu_custom_call.1} parent=1 // pred_check
      _
    $region3: #{tpu_custom_call.1} parent=1 // pred_check_branch
      %12 = sbr.rel (0) target = $region5
    $region4: #{tpu_custom_call.1} parent=1 // pred_region
      %s14 = ssub.s32 2048, 2048
      %15 = vsyncadd [#allocation3], %s14
      %s16 = sshll.u32 [#allocation2], 4
      %s17 = int_to_ptr.vmem [resolvable:$true] %s16
      %22 = dma.hbm_to_vmem [thread:$0]  %s0, 2048, %s17, [#allocation3], 512, 512, 32
    $region5: #{tpu_custom_call.1} parent=1 // pred_fallthru
      _
    // Predicated region
    $region6: #{tpu_custom_call.1} parent=1 // pred_check
      _
    $region7: #{tpu_custom_call.1} parent=1 // pred_check_branch
      %24 = sbr.rel (0) target = $region9
    $region8: #{tpu_custom_call.1} parent=1 // pred_region
      %s26 = ssub.s32 6400, 6400
      %27 = vsyncadd [#allocation6], %s26
      %s28 = sshll.u32 [#allocation5], 4
      %s29 = int_to_ptr.vmem [resolvable:$true] %s28
      %34 = dma.hbm_to_vmem [thread:$0]  %s1, 6400, %s29, [#allocation6], 128, 128, 8
    $region9: #{tpu_custom_call.1} parent=1 // pred_fallthru
      _
    // Predicated region
    $region10: #{tpu_custom_call.1} parent=1 // pred_check
      _
    $region11: #{tpu_custom_call.1} parent=1 // pred_check_branch
      %36 = sbr.rel (0) target = $region13
    $region12: #{tpu_custom_call.1} parent=1 // pred_region
      _
    $region13: #{tpu_custom_call.1} parent=1 // pred_fallthru
      _
    // Predicated region
    $region14: #{tpu_custom_call.1} parent=1 // pred_check
      _
    $region15: #{tpu_custom_call.1} parent=1 // pred_check_branch
      %38 = sbr.rel (0) target = $region17
    $region16: #{tpu_custom_call.1} parent=1 // pred_region
      %39 = dma.done [#allocation3], 2048
    $region17: #{tpu_custom_call.1} parent=1 // pred_fallthru
      _
    // Predicated region
    $region18: #{tpu_custom_call.1} parent=1 // pred_check
      _
    $region19: #{tpu_custom_call.1} parent=1 // pred_check_branch
      %41 = sbr.rel (0) target = $region21
    $region20: #{tpu_custom_call.1} parent=1 // pred_region
      %42 = dma.done [#allocation6], 6400
    $region21: #{tpu_custom_call.1} parent=1 // pred_fallthru
      _
    %v43 = vld [vmem:[#allocation2] sm:$0xff]
    %v44 = vld [vmem:[#allocation2 + $0x8] sm:$0xff]
    %v45 = vld [vmem:[#allocation2 + $0x10] sm:$0xff]
    %v46 = vld [vmem:[#allocation2 + $0x18] sm:$0xff]
    %v47 = vld [vmem:[#allocation2 + $0x20] sm:$0xff]
    %v48 = vld [vmem:[#allocation2 + $0x28] sm:$0xff]
    %v49 = vld [vmem:[#allocation2 + $0x30] sm:$0xff]
    %v50 = vld [vmem:[#allocation2 + $0x38] sm:$0xff]
    %v51 = vld [vmem:[#allocation2 + $0x40] sm:$0xff]
    %v52 = vld [vmem:[#allocation2 + $0x48] sm:$0xff]
    %v53 = vld [vmem:[#allocation2 + $0x50] sm:$0xff]
    %v54 = vld [vmem:[#allocation2 + $0x58] sm:$0xff]
    %v55 = vld [vmem:[#allocation2 + $0x60] sm:$0xff]
    %v56 = vld [vmem:[#allocation2 + $0x68] sm:$0xff]
    %v57 = vld [vmem:[#allocation2 + $0x70] sm:$0xff]
    %v58 = vld [vmem:[#allocation2 + $0x78] sm:$0xff]
    %v59 = vld [vmem:[#allocation5] sm:$0xff]
    %v60 = vld [vmem:[#allocation5 + $0x8] sm:$0xff]
    %v61 = vld [vmem:[#allocation5 + $0x10] sm:$0xff]
    %v62 = vld [vmem:[#allocation5 + $0x18] sm:$0xff]
    %v63 = vld [vmem:[#allocation5 + $0x20] sm:$0xff]
    %v64 = vld [vmem:[#allocation5 + $0x28] sm:$0xff]
    %v65 = vld [vmem:[#allocation5 + $0x30] sm:$0xff]
    %v66 = vld [vmem:[#allocation5 + $0x38] sm:$0xff]
    %v67 = vld [vmem:[#allocation5 + $0x40] sm:$0xff]
    %v68 = vld [vmem:[#allocation5 + $0x48] sm:$0xff]
    %v69 = vld [vmem:[#allocation5 + $0x50] sm:$0xff]
    %v70 = vld [vmem:[#allocation5 + $0x58] sm:$0xff]
    %v71 = vld [vmem:[#allocation5 + $0x60] sm:$0xff]
    %v72 = vld [vmem:[#allocation5 + $0x68] sm:$0xff]
    %v73 = vld [vmem:[#allocation5 + $0x70] sm:$0xff]
    %v74 = vld [vmem:[#allocation5 + $0x78] sm:$0xff]
    %v75 = vld [vmem:[#allocation5 + $0x80] sm:$0xff]
    %v76 = vld [vmem:[#allocation5 + $0x88] sm:$0xff]
    %v77 = vld [vmem:[#allocation5 + $0x90] sm:$0xff]
    %v78 = vld [vmem:[#allocation5 + $0x98] sm:$0xff]
    %v79 = vld [vmem:[#allocation5 + $0xa0] sm:$0xff]
    %v80 = vld [vmem:[#allocation5 + $0xa8] sm:$0xff]
    %v81 = vld [vmem:[#allocation5 + $0xb0] sm:$0xff]
    %v82 = vld [vmem:[#allocation5 + $0xb8] sm:$0xff]
    %v83 = vld [vmem:[#allocation5 + $0xc0] sm:$0xff]
    %v84 = vld [vmem:[#allocation5 + $0xc8] sm:$0xff]
    %v85 = vld [vmem:[#allocation5 + $0xd0] sm:$0xff]
    %v86 = vld [vmem:[#allocation5 + $0xd8] sm:$0xff]
    %v87 = vld [vmem:[#allocation5 + $0xe0] sm:$0xff]
    %v88 = vld [vmem:[#allocation5 + $0xe8] sm:$0xff]
    %v89 = vld [vmem:[#allocation5 + $0xf0] sm:$0xff]
    %v90 = vld [vmem:[#allocation5 + $0xf8] sm:$0xff]
    %v91 = vld [vmem:[#allocation5 + $0x100] sm:$0xff]
    %v92 = vld [vmem:[#allocation5 + $0x108] sm:$0xff]
    %v93 = vld [vmem:[#allocation5 + $0x110] sm:$0xff]
    %v94 = vld [vmem:[#allocation5 + $0x118] sm:$0xff]
    %v95 = vld [vmem:[#allocation5 + $0x120] sm:$0xff]
    %v96 = vld [vmem:[#allocation5 + $0x128] sm:$0xff]
    %v97 = vld [vmem:[#allocation5 + $0x130] sm:$0xff]
    %v98 = vld [vmem:[#allocation5 + $0x138] sm:$0xff]
    %v99 = vld [vmem:[#allocation5 + $0x140] sm:$0xff]
    %v100 = vld [vmem:[#allocation5 + $0x148] sm:$0xff]
    %v101 = vld [vmem:[#allocation5 + $0x150] sm:$0xff]
    %v102 = vld [vmem:[#allocation5 + $0x158] sm:$0xff]
    %v103 = vld [vmem:[#allocation5 + $0x160] sm:$0xff]
    %v104 = vld [vmem:[#allocation5 + $0x168] sm:$0xff]
    %v105 = vld [vmem:[#allocation5 + $0x170] sm:$0xff]
    %v106 = vld [vmem:[#allocation5 + $0x178] sm:$0xff]
    %v107 = vld [vmem:[#allocation5 + $0x180] sm:$0xff]
    %v108 = vld [vmem:[#allocation5 + $0x188] sm:$0xff]
    %v109 = vld [vmem:[%s2] sm:$0x1]
    %v111 = vlaneseq
    %v112 = vshrl.u32 %v111, 7
    %v113 = vsub.s32 0, %v112
    %v114 = vrot.slane %v109, %v113
    %vm116 = vcmask 130048
    %v118 = vsel %vm116, %v46, 0
    %v121 = vsel %vm116, %v50, 0
    %v124 = vsel %vm116, %v54, 0
    %v127 = vsel %vm116, %v58, 0
    %129 = vmatprep.subr.mxu0 0.0
    %130 = vmatpush1.msra.mxu0 %v74
    %131 = vmatprep.subr.mxu0 0.0
    %132 = vmatpush1.msra.mxu0 %v73
    %133 = vmatprep.subr.mxu0 0.0
    %134 = vmatpush1.msra.mxu0 %v72
    %135 = vmatprep.subr.mxu0 0.0
    %136 = vmatpush1.msra.mxu0 %v71
    %137 = vmatprep.subr.mxu0 0.0
    %138 = vmatpush1.msra.mxu0 %v70
    %139 = vmatprep.subr.mxu0 0.0
    %140 = vmatpush1.msra.mxu0 %v69
    %141 = vmatprep.subr.mxu0 0.0
    %142 = vmatpush1.msra.mxu0 %v68
    %143 = vmatprep.subr.mxu0 0.0
    %144 = vmatpush1.msra.mxu0 %v67
    %145 = vmatprep.subr.mxu0 0.0
    %146 = vmatpush1.msra.mxu0 %v66
    %147 = vmatprep.subr.mxu0 0.0
    %148 = vmatpush1.msra.mxu0 %v65
    %149 = vmatprep.subr.mxu0 0.0
    %150 = vmatpush1.msra.mxu0 %v64
    %151 = vmatprep.subr.mxu0 0.0
    %152 = vmatpush1.msra.mxu0 %v63
    %153 = vmatprep.subr.mxu0 0.0
    %154 = vmatpush1.msra.mxu0 %v62
    %155 = vmatprep.subr.mxu0 0.0
    %156 = vmatpush1.msra.mxu0 %v61
    %157 = vmatprep.subr.mxu0 0.0
    %158 = vmatpush1.msra.mxu0 %v60
    %159 = vmatprep.subr.mxu0 0.0
    %160 = vmatpush1.msra.mxu0 %v59
    %161 = vmatprep.subr.mxu0 0.0
    %162 = vmatpush2.msra.mxu0 %v90
    %163 = vmatprep.subr.mxu0 0.0
    %164 = vmatpush2.msra.mxu0 %v89
    %165 = vmatprep.subr.mxu0 0.0
    %166 = vmatpush2.msra.mxu0 %v88
    %167 = vmatprep.subr.mxu0 0.0
    %168 = vmatpush2.msra.mxu0 %v87
    %169 = vmatprep.subr.mxu0 0.0
    %170 = vmatpush2.msra.mxu0 %v86
    %171 = vmatprep.subr.mxu0 0.0
    %172 = vmatpush2.msra.mxu0 %v85
    %173 = vmatprep.subr.mxu0 0.0
    %174 = vmatpush2.msra.mxu0 %v84
    %175 = vmatprep.subr.mxu0 0.0
    %176 = vmatpush2.msra.mxu0 %v83
    %177 = vmatprep.subr.mxu0 0.0
    %178 = vmatpush2.msra.mxu0 %v82
    %179 = vmatprep.subr.mxu0 0.0
    %180 = vmatpush2.msra.mxu0 %v81
    %181 = vmatprep.subr.mxu0 0.0
    %182 = vmatpush2.msra.mxu0 %v80
    %183 = vmatprep.subr.mxu0 0.0
    %184 = vmatpush2.msra.mxu0 %v79
    %185 = vmatprep.subr.mxu0 0.0
    %186 = vmatpush2.msra.mxu0 %v78
    %187 = vmatprep.subr.mxu0 0.0
    %188 = vmatpush2.msra.mxu0 %v77
    %189 = vmatprep.subr.mxu0 0.0
    %190 = vmatpush2.msra.mxu0 %v76
    %191 = vmatprep.subr.mxu0 0.0
    %192 = vmatpush2.msra.mxu0 %v75
    %193 = vmatprep.mubr.f32.mxu0 %v44
    %194 = vmatmul.mubr.f32.gmra.mxu0 %v43
    %v195 = vpop.f32.mrf.mxu0
    %v196 = vadd.f32 %v114, %v195
    %v197 = vpop.f32.mrf.mxu0
    %198 = vmatprep.mubr.f32.mxu0 %v48
    %199 = vmatmul.mubr.f32.gmra.mxu0 %v47
    %v200 = vpop.f32.mrf.mxu0
    %v201 = vadd.f32 %v114, %v200
    %v202 = vpop.f32.mrf.mxu0
    %203 = vmatprep.mubr.f32.mxu0 %v52
    %204 = vmatmul.mubr.f32.gmra.mxu0 %v51
    %v205 = vpop.f32.mrf.mxu0
    %v206 = vadd.f32 %v114, %v205
    %v207 = vpop.f32.mrf.mxu0
    %208 = vmatprep.mubr.f32.mxu0 %v56
    %209 = vmatmul.mubr.f32.gmra.mxu0 %v55
    %v210 = vpop.f32.mrf.mxu0
    %v211 = vadd.f32 %v114, %v210
    %v212 = vpop.f32.mrf.mxu0
    %213 = vdwg.mxu0
    %214 = vmatprep.subr.mxu0 0.0
    %215 = vmatpush1.msra.mxu0 %v106
    %216 = vmatprep.subr.mxu0 0.0
    %217 = vmatpush1.msra.mxu0 %v105
    %218 = vmatprep.subr.mxu0 0.0
    %219 = vmatpush1.msra.mxu0 %v104
    %220 = vmatprep.subr.mxu0 0.0
    %221 = vmatpush1.msra.mxu0 %v103
    %222 = vmatprep.subr.mxu0 0.0
    %223 = vmatpush1.msra.mxu0 %v102
    %224 = vmatprep.subr.mxu0 0.0
    %225 = vmatpush1.msra.mxu0 %v101
    %226 = vmatprep.subr.mxu0 0.0
    %227 = vmatpush1.msra.mxu0 %v100
    %228 = vmatprep.subr.mxu0 0.0
    %229 = vmatpush1.msra.mxu0 %v99
    %230 = vmatprep.subr.mxu0 0.0
    %231 = vmatpush1.msra.mxu0 %v98
    %232 = vmatprep.subr.mxu0 0.0
    %233 = vmatpush1.msra.mxu0 %v97
    %234 = vmatprep.subr.mxu0 0.0
    %235 = vmatpush1.msra.mxu0 %v96
    %236 = vmatprep.subr.mxu0 0.0
    %237 = vmatpush1.msra.mxu0 %v95
    %238 = vmatprep.subr.mxu0 0.0
    %239 = vmatpush1.msra.mxu0 %v94
    %240 = vmatprep.subr.mxu0 0.0
    %241 = vmatpush1.msra.mxu0 %v93
    %242 = vmatprep.subr.mxu0 0.0
    %243 = vmatpush1.msra.mxu0 %v92
    %244 = vmatprep.subr.mxu0 0.0
    %245 = vmatpush1.msra.mxu0 %v91
    %246 = vmatprep.subr.mxu0 0.0
    %247 = vmatpush2.msra.mxu0 0.0
    %248 = vmatprep.subr.mxu0 0.0
    %249 = vmatpush2.msra.mxu0 0.0
    %250 = vmatprep.subr.mxu0 0.0
    %251 = vmatpush2.msra.mxu0 0.0
    %252 = vmatprep.subr.mxu0 0.0
    %253 = vmatpush2.msra.mxu0 0.0
    %254 = vmatprep.subr.mxu0 0.0
    %255 = vmatpush2.msra.mxu0 0.0
    %256 = vmatprep.subr.mxu0 0.0
    %257 = vmatpush2.msra.mxu0 0.0
    %258 = vmatprep.subr.mxu0 0.0
    %259 = vmatpush2.msra.mxu0 0.0
    %260 = vmatprep.subr.mxu0 0.0
    %261 = vmatpush2.msra.mxu0 0.0
    %262 = vmatprep.subr.mxu0 0.0
    %263 = vmatpush2.msra.mxu0 0.0
    %264 = vmatprep.subr.mxu0 0.0
    %265 = vmatpush2.msra.mxu0 0.0
    %266 = vmatprep.subr.mxu0 0.0
    %267 = vmatpush2.msra.mxu0 0.0
    %268 = vmatprep.subr.mxu0 0.0
    %269 = vmatpush2.msra.mxu0 0.0
    %270 = vmatprep.subr.mxu0 0.0
    %271 = vmatpush2.msra.mxu0 0.0
    %272 = vmatprep.subr.mxu0 0.0
    %273 = vmatpush2.msra.mxu0 0.0
    %274 = vmatprep.subr.mxu0 0.0
    %275 = vmatpush2.msra.mxu0 %v108
    %276 = vmatprep.subr.mxu0 0.0
    %277 = vmatpush2.msra.mxu0 %v107
    %278 = vmatprep.mubr.f32.mxu0 %v118
    %279 = vmatmul.mubr.f32.gmra.mxu0 %v45
    %v280 = vpop.f32.mrf.mxu0
    %v281 = vadd.f32 %v196, %v280
    %v282 = vpop.f32.mrf.mxu0
    %283 = vmatprep.mubr.f32.mxu0 %v121
    %284 = vmatmul.mubr.f32.gmra.mxu0 %v49
    %v285 = vpop.f32.mrf.mxu0
    %v286 = vadd.f32 %v201, %v285
    %v287 = vpop.f32.mrf.mxu0
    %288 = vmatprep.mubr.f32.mxu0 %v124
    %289 = vmatmul.mubr.f32.gmra.mxu0 %v53
    %v290 = vpop.f32.mrf.mxu0
    %v291 = vadd.f32 %v206, %v290
    %v292 = vpop.f32.mrf.mxu0
    %293 = vmatprep.mubr.f32.mxu0 %v127
    %294 = vmatmul.mubr.f32.gmra.mxu0 %v57
    %v295 = vpop.f32.mrf.mxu0
    %v296 = vadd.f32 %v211, %v295
    %v297 = vpop.f32.mrf.mxu0
    %298 = vdwg.mxu0
    %v299 = vmax.f32 %v281, 0.0
    %v300 = vmax.f32 %v286, 0.0
    %v301 = vmax.f32 %v291, 0.0
    %v302 = vmax.f32 %v296, 0.0
    %303 = vst [vmem:[#allocation7] sm:$0xff] %v299
    %304 = vst [vmem:[#allocation7 + $0x8] sm:$0xff] %v300
    %305 = vst [vmem:[#allocation7 + $0x10] sm:$0xff] %v301
    %306 = vst [vmem:[#allocation7 + $0x18] sm:$0xff] %v302
    // Predicated region
    $region22: #{tpu_custom_call.1} parent=1 // pred_check
      _
    $region23: #{tpu_custom_call.1} parent=1 // pred_check_branch
      %308 = sbr.rel (0) target = $region25
    $region24: #{tpu_custom_call.1} parent=1 // pred_region
      %s310 = ssub.s32 512, 512
      %311 = vsyncadd [#allocation4], %s310
      %s312 = sshll.u32 [#allocation7], 4
      %s313 = int_to_ptr.vmem [resolvable:$true] %s312
      %318 = dma.vmem_to_hbm [thread:$0]  %s313, 512, %s3, [#allocation4], 128, 128, 8
    $region25: #{tpu_custom_call.1} parent=1 // pred_fallthru
      _
    // Predicated region
    $region26: #{tpu_custom_call.1} parent=1 // pred_check
      _
    $region27: #{tpu_custom_call.1} parent=1 // pred_check_branch
      %320 = sbr.rel (0) target = $region29
    $region28: #{tpu_custom_call.1} parent=1 // pred_region
      %321 = dma.done [#allocation4], 512
    $region29: #{tpu_custom_call.1} parent=1 // pred_fallthru
      _
    %322 = vsyncpa [#allocation3], 1
    %323 = vsyncpa [#allocation6], 1
    %324 = vsyncpa [#allocation4], 1

</llo_original>
